<compile_context>
chip_gen: v7x
topology: tpu7x:2x2x1
jax: 0.10.0
libtpu: 0.0.40
codegen_flags: <defaults>
</compile_context>

<pallas_src>
import math

import jax
import jax.numpy as jnp
from jax import lax
from jax.experimental import pallas as pl
from jax.experimental.pallas import tpu as pltpu


# ----------------------------- glue (plain JAX) -----------------------------

def normalize_adj(adj, eps=1e-5):
    """Symmetric normalization D^-1/2 (A [+ I]) D^-1/2, matching the PyTorch ref
    (self-loops added to ALL nodes iff ANY diagonal entry is zero)."""
    n = adj.shape[0]
    needs_self_loops = jnp.any(jnp.diag(adj) == 0)
    adj = jnp.where(needs_self_loops, adj + jnp.eye(n, dtype=adj.dtype), adj)
    degree = adj.sum(axis=1)
    d_inv_sqrt = jnp.diag(1.0 / jnp.sqrt(degree + eps))
    return d_inv_sqrt @ adj @ d_inv_sqrt


def kaiming_uniform(key, fan_in, shape, dtype=jnp.float32):
    # matches init.kaiming_uniform_(w, a=sqrt(5)): bound = sqrt(6/((1+a^2)*fan_in))
    gain = math.sqrt(2.0 / (1.0 + 5.0))
    bound = gain * math.sqrt(3.0 / fan_in)
    return jax.random.uniform(key, shape, dtype, minval=-bound, maxval=bound)


def bias_uniform(key, fan_in, shape, dtype=jnp.float32):
    bound = 1.0 / math.sqrt(fan_in) if fan_in > 0 else 0.0
    return jax.random.uniform(key, shape, dtype, minval=-bound, maxval=bound)


# ----------------------- static (per-model) preparation ----------------------

def _default_lane_cap():
    """Per-generation lane-block target (see review): 128 on v5e, 256 elsewhere."""
    try:
        kind = jax.devices()[0].device_kind.lower()
    except Exception:
        kind = ""
    if "v5e" in kind or "v5 lite" in kind or "v5lite" in kind:
        return 128
    return 256


def _choose_lane_block(total, num_nodes, lane_cap, max_lane_block=1024):
    """Pick the number of lanes handled per grid step.

    lane_block is a multiple of the slab size N (so block-diagonal tiles stay
    slab-aligned) and of 8 (sublanes), and is capped at max_lane_block so the
    lane_block^2 block-diagonal adjacency (single-buffered whole-array VMEM
    operand) never threatens the scoped VMEM limit on any generation.
    """
    base = (num_nodes * 8) // math.gcd(num_nodes, 8)        # lcm(N, 8)
    cap = max(base, min(lane_cap, max_lane_block))
    lane_block = (cap // base) * base
    total_pad_base = -(-total // base) * base                # don't exceed padded problem
    lane_block = min(lane_block, total_pad_base)
    return max(lane_block, base)


def prepare_gcn_operands(adj_norm, w1, b1, w2, b2, num_nodes, total, lane_cap=None):
    """Compute everything that only depends on parameters / adjacency ONCE
    (outside the jitted forward): block-diagonal kron(I, adj^T), W^T, bias
    reshapes."""
    if lane_cap is None:
        lane_cap = _default_lane_cap()
    lane_block = _choose_lane_block(total, num_nodes, lane_cap)
    assert lane_block % num_nodes == 0
    slabs_per_block = lane_block // num_nodes
    adj_blk = jnp.kron(jnp.eye(slabs_per_block, dtype=adj_norm.dtype), adj_norm.T)
    return {
        "adj_blk": adj_blk,                       # (L, L)   block-diag kron(I, adj^T)
        "w1t": jnp.asarray(w1).T,                 # (H, Cin)
        "b1c": jnp.reshape(b1, (-1, 1)),          # (H, 1)
        "w2t": jnp.asarray(w2).T,                 # (Cout, H)
        "b2r": jnp.reshape(b2, (1, -1)),          # (1, Cout)
    }


# ------------------------------ Pallas kernel -------------------------------

def gcn_layer_kernel(x_ref, adjb_ref, w1t_ref, b1_ref, w2t_ref, b2_ref, o_ref):
    # x_ref   : (L, Cin)  slab-major node features for this lane block
    # adjb_ref: (L, L)    block-diagonal kron(I, adj^T)  (whole array, single buffer)
    # w1t_ref : (H, Cin)     b1_ref: (H, 1)
    # w2t_ref : (Cout, H)    b2_ref: (1, Cout)
    # o_ref   : (L, Cout)
    #
    # Layer 1 (adjacency first, same order as the reference; Cin < H):
    #   ax[c, l] = sum_m x[m, c] * adjb[m, l]                      -> (Cin, L)
    ax = lax.dot_general(x_ref[...], adjb_ref[...],
                         (((0,), (0,)), ((), ())),
                         preferred_element_type=jnp.float32)
    #   h^T = relu(W1^T @ ax + b1)                                  -> (H, L)
    h = jnp.maximum(
        jnp.dot(w1t_ref[...], ax, preferred_element_type=jnp.float32) + b1_ref[...],
        0.0)

    # Layer 2 reassociated (weight first; Cout < H):
    #   gw = W2^T @ h^T                                             -> (Cout, L)
    gw = jnp.dot(w2t_ref[...], h, preferred_element_type=jnp.float32)
    #   out[l, c] = sum_m adjb[m, l] * gw[c, m]  (+ b2)             -> (L, Cout)
    # adjb_ref is indexed again here (not bound once above) so the compiler is
    # free to re-stream it instead of keeping a full L x L value live.
    out = lax.dot_general(adjb_ref[...], gw,
                          (((0,), (1,)), ((), ())),
                          preferred_element_type=jnp.float32) + b2_ref[...]
    o_ref[...] = out.astype(o_ref.dtype)


@jax.jit
def gcn_layer_forward(x, adj_blk, w1t, b1c, w2t, b2r):
    B, T, N, Cin = x.shape
    Cout = w2t.shape[0]
    lane_block = adj_blk.shape[0]
    total = B * T * N
    num_blocks = -(-total // lane_block)
    total_pad = num_blocks * lane_block

    # Free reshape: (B, T, N, Cin) -> (B*T*N, Cin) slab-major.
    x2d = x.reshape(total, Cin)
    if total_pad != total:
        # Pad with whole zero slabs; block-diagonal contraction keeps them
        # decoupled from real slabs, and they are sliced away below.
        x2d = jnp.pad(x2d, ((0, total_pad - total), (0, 0)))

    out2d = pl.pallas_call(
        gcn_layer_kernel,
        out_shape=jax.ShapeDtypeStruct((total_pad, Cout), x.dtype),
        grid=(num_blocks,),
        in_specs=[
            # Activations: blocked along the lane axis.
            pl.BlockSpec((lane_block, Cin), lambda i: (i, 0)),
            # Grid-invariant operands: whole-array VMEM residency (no
            # double-buffering / per-step revisit bookkeeping).
            pl.BlockSpec(memory_space=pltpu.MemorySpace.VMEM),   # blockdiag(adj^T)
            pl.BlockSpec(memory_space=pltpu.MemorySpace.VMEM),   # W1^T
            pl.BlockSpec(memory_space=pltpu.MemorySpace.VMEM),   # b1
            pl.BlockSpec(memory_space=pltpu.MemorySpace.VMEM),   # W2^T
            pl.BlockSpec(memory_space=pltpu.MemorySpace.VMEM),   # b2
        ],
        out_specs=pl.BlockSpec((lane_block, Cout), lambda i: (i, 0)),
        compiler_params=pltpu.CompilerParams(
            dimension_semantics=("arbitrary",),
        ),
    )(x2d, adj_blk, w1t, b1c, w2t, b2r)

    if total_pad != total:
        out2d = out2d[:total]
    # Free reshape back to (B, T, N, Cout).
    return out2d.reshape(B, T, N, Cout)


# ------------------------------- reference ----------------------------------

def gcn_layer_ref(x, adj_norm, w1, b1, w2, b2):
    h = jnp.einsum("hi,btij->bthj", adj_norm, x)
    h = jnp.einsum("bthi,ij->bthj", h, w1) + b1
    h = jnp.maximum(h, 0.0)
    h2 = jnp.einsum("hi,btij->bthj", adj_norm, h)
    out = jnp.einsum("bthi,ij->bthj", h2, w2) + b2
    return out


# --------------------------------- main --------------------------------------

if __name__ == "__main__":
    B, T, N = 2, 8, 16
    in_channels, hidden_size, out_channels = 4, 32, 8

    key = jax.random.PRNGKey(0)
    k_adj, k_x, k_w1, k_b1, k_w2, k_b2 = jax.random.split(key, 6)

    # Deterministic synthetic adjacency: symmetric 0/1 matrix with zero diag
    # (self-loops added inside normalize_adj, like the PyTorch code path).
    a_raw = (jax.random.uniform(k_adj, (N, N)) > 0.7).astype(jnp.float32)
    adj = jnp.maximum(a_raw, a_raw.T)
    adj = adj * (1.0 - jnp.eye(N, dtype=jnp.float32))
    adj_norm = normalize_adj(adj)            # computed once, outside the forward

    # Parameter init matching GraphConv.reset_parameters shapes/ranges.
    w1 = kaiming_uniform(k_w1, in_channels, (in_channels, hidden_size))
    b1 = bias_uniform(k_b1, in_channels, (hidden_size,))
    w2 = kaiming_uniform(k_w2, hidden_size, (hidden_size, out_channels))
    b2 = bias_uniform(k_b2, hidden_size, (out_channels,))

    x = jax.random.normal(k_x, (B, T, N, in_channels), dtype=jnp.float32)

    # Static preprocessing hoisted out of the jitted forward (done once).
    ops = prepare_gcn_operands(adj_norm, w1, b1, w2, b2, N, B * T * N)

    out = gcn_layer_forward(x, ops["adj_blk"], ops["w1t"], ops["b1c"],
                            ops["w2t"], ops["b2r"])
    out = jax.block_until_ready(out)

    ref = gcn_layer_ref(x, adj_norm, w1, b1, w2, b2)
    assert out.shape == (B, T, N, out_channels)
    assert jnp.allclose(out, ref, atol=1e-4, rtol=1e-4), \
        f"max abs err = {jnp.max(jnp.abs(out - ref))}"

    print("KERNEL_OK")
</pallas_src>

<mosaic_0001>
module attributes {stable_mosaic.version = 11 : i64} {
  func.func @gcn_layer_kernel(%arg0: i32, %arg1: memref<256x4xf32, #tpu.memory_space<vmem>>, %arg2: memref<256x256xf32, #tpu.memory_space<vmem>>, %arg3: memref<32x4xf32, #tpu.memory_space<vmem>>, %arg4: memref<32x1xf32, #tpu.memory_space<vmem>>, %arg5: memref<8x32xf32, #tpu.memory_space<vmem>>, %arg6: memref<1x8xf32, #tpu.memory_space<vmem>>, %arg7: memref<256x8xf32, #tpu.memory_space<vmem>>) attributes {dimension_semantics = [#tpu.dimension_semantics<arbitrary>], iteration_bounds = array<i64: 1>, scalar_prefetch = 0 : i64, scratch_operands = 0 : i64, tpu.core_type = #tpu.core_type<tc>, window_params = [{transform_indices = @transform_0, window_bounds = array<i64: 256, 4>}, {pipeline_mode = #tpu.pipeline_mode<synchronous>, transform_indices = @transform_1, window_bounds = array<i64: 256, 256>}, {pipeline_mode = #tpu.pipeline_mode<synchronous>, transform_indices = @transform_2, window_bounds = array<i64: 32, 4>}, {pipeline_mode = #tpu.pipeline_mode<synchronous>, transform_indices = @transform_3, window_bounds = array<i64: 32, 1>}, {pipeline_mode = #tpu.pipeline_mode<synchronous>, transform_indices = @transform_4, window_bounds = array<i64: 8, 32>}, {pipeline_mode = #tpu.pipeline_mode<synchronous>, transform_indices = @transform_5, window_bounds = array<i64: 1, 8>}, {transform_indices = @transform_6, window_bounds = array<i64: 256, 8>}]} {
    %c0 = arith.constant 0 : index
    %c0_0 = arith.constant 0 : index
    %0 = vector.load %arg1[%c0, %c0_0] : memref<256x4xf32, #tpu.memory_space<vmem>>, vector<256x4xf32>
    %c0_1 = arith.constant 0 : index
    %c0_2 = arith.constant 0 : index
    %1 = vector.load %arg2[%c0_1, %c0_2] : memref<256x256xf32, #tpu.memory_space<vmem>>, vector<256x256xf32>
    %cst = arith.constant dense<0.000000e+00> : vector<4x256xf32>
    %2 = tpu.matmul %0, %1, %cst {dimension_numbers = #tpu.dot_dimension_numbers<[0], [0], [1], [1], [0, 1, 1, 1], [], []>} : vector<256x4xf32>, vector<256x256xf32>, vector<4x256xf32> -> vector<4x256xf32>
    %c0_3 = arith.constant 0 : index
    %c0_4 = arith.constant 0 : index
    %3 = vector.load %arg3[%c0_3, %c0_4] : memref<32x4xf32, #tpu.memory_space<vmem>>, vector<32x4xf32>
    %cst_5 = arith.constant dense<0.000000e+00> : vector<32x256xf32>
    %4 = tpu.matmul %3, %2, %cst_5 {dimension_numbers = #tpu.dot_dimension_numbers<[1], [0], [0], [1], [0, 0, 1, 1], [], []>} : vector<32x4xf32>, vector<4x256xf32>, vector<32x256xf32> -> vector<32x256xf32>
    %c0_6 = arith.constant 0 : index
    %c0_7 = arith.constant 0 : index
    %5 = vector.load %arg4[%c0_6, %c0_7] : memref<32x1xf32, #tpu.memory_space<vmem>>, vector<32x1xf32>
    %6 = vector.broadcast %5 : vector<32x1xf32> to vector<32x256xf32>
    %7 = arith.addf %4, %6 : vector<32x256xf32>
    %cst_8 = arith.constant 0.000000e+00 : f32
    %8 = vector.broadcast %cst_8 : f32 to vector<32x256xf32>
    %9 = arith.maximumf %7, %8 : vector<32x256xf32>
    %c0_9 = arith.constant 0 : index
    %c0_10 = arith.constant 0 : index
    %10 = vector.load %arg5[%c0_9, %c0_10] : memref<8x32xf32, #tpu.memory_space<vmem>>, vector<8x32xf32>
    %cst_11 = arith.constant dense<0.000000e+00> : vector<8x256xf32>
    %11 = tpu.matmul %10, %9, %cst_11 {dimension_numbers = #tpu.dot_dimension_numbers<[1], [0], [0], [1], [0, 0, 1, 1], [], []>} : vector<8x32xf32>, vector<32x256xf32>, vector<8x256xf32> -> vector<8x256xf32>
    %c0_12 = arith.constant 0 : index
    %c0_13 = arith.constant 0 : index
    %12 = vector.load %arg2[%c0_12, %c0_13] : memref<256x256xf32, #tpu.memory_space<vmem>>, vector<256x256xf32>
    %cst_14 = arith.constant dense<0.000000e+00> : vector<256x8xf32>
    %13 = tpu.matmul %12, %11, %cst_14 {dimension_numbers = #tpu.dot_dimension_numbers<[0], [1], [1], [0], [0, 1, 1, 0], [], []>} : vector<256x256xf32>, vector<8x256xf32>, vector<256x8xf32> -> vector<256x8xf32>
    %c0_15 = arith.constant 0 : index
    %c0_16 = arith.constant 0 : index
    %14 = vector.load %arg6[%c0_15, %c0_16] : memref<1x8xf32, #tpu.memory_space<vmem>>, vector<1x8xf32>
    %15 = vector.broadcast %14 : vector<1x8xf32> to vector<256x8xf32>
    %16 = arith.addf %13, %15 : vector<256x8xf32>
    %c0_17 = arith.constant 0 : index
    %c0_18 = arith.constant 0 : index
    %17 = vector.load %arg7[%c0_17, %c0_18] : memref<256x8xf32, #tpu.memory_space<vmem>>, vector<256x8xf32>
    tpu.vector_store %arg7[%c0_17, %c0_18], %16 {strides = array<i32>} : memref<256x8xf32, #tpu.memory_space<vmem>>, vector<256x8xf32>,
    return
  }
  func.func @transform_0(%arg0: i32) -> (i32, i32) {
    %c0_i32 = arith.constant 0 : i32
    %c0_i32_0 = arith.constant 0 : i32
    return %arg0, %c0_i32 : i32, i32
  }
  func.func @transform_1(%arg0: i32) -> (i32, i32) {
    %c0_i32 = arith.constant 0 : i32
    %c0_i32_0 = arith.constant 0 : i32
    %c0_i32_1 = arith.constant 0 : i32
    return %c0_i32, %c0_i32_0 : i32, i32
  }
  func.func @transform_2(%arg0: i32) -> (i32, i32) {
    %c0_i32 = arith.constant 0 : i32
    %c0_i32_0 = arith.constant 0 : i32
    %c0_i32_1 = arith.constant 0 : i32
    return %c0_i32, %c0_i32_0 : i32, i32
  }
  func.func @transform_3(%arg0: i32) -> (i32, i32) {
    %c0_i32 = arith.constant 0 : i32
    %c0_i32_0 = arith.constant 0 : i32
    %c0_i32_1 = arith.constant 0 : i32
    return %c0_i32, %c0_i32_0 : i32, i32
  }
  func.func @transform_4(%arg0: i32) -> (i32, i32) {
    %c0_i32 = arith.constant 0 : i32
    %c0_i32_0 = arith.constant 0 : i32
    %c0_i32_1 = arith.constant 0 : i32
    return %c0_i32, %c0_i32_0 : i32, i32
  }
  func.func @transform_5(%arg0: i32) -> (i32, i32) {
    %c0_i32 = arith.constant 0 : i32
    %c0_i32_0 = arith.constant 0 : i32
    %c0_i32_1 = arith.constant 0 : i32
    return %c0_i32, %c0_i32_0 : i32, i32
  }
  func.func @transform_6(%arg0: i32) -> (i32, i32) {
    %c0_i32 = arith.constant 0 : i32
    %c0_i32_0 = arith.constant 0 : i32
    return %arg0, %c0_i32 : i32, i32
  }
}

</mosaic_0001>

<llo_original>
// kernel: gcn_layer_forward.1
$region0: #{gcn_layer_forward.1}
  #allocation0 [shape = 'u32[]', space=smem, size = 0x4, offset = 0x4, fixed_abs, tag = 'smem constant byte address 0x4 - core index']
  #allocation1 [shape = 'u32[144,128]{1,0:T(1,128)}', space=vmem, size = 0x12000, scoped, tag = 'internal scratch']
  %s0 = inlined_call_operand.vmem [shape: f32[256,4], index: 0, kind: input, shape index: {}]
  %s1 = inlined_call_operand.hbm [shape: f32[256,256], index: 1, kind: input, shape index: {}]
  %s2 = inlined_call_operand.vmem [shape: f32[32,4], index: 2, kind: input, shape index: {}]
  %s3 = inlined_call_operand.vmem [shape: f32[32,1], index: 3, kind: input, shape index: {}]
  %s4 = inlined_call_operand.vmem [shape: f32[8,32], index: 4, kind: input, shape index: {}]
  %s5 = inlined_call_operand.vmem [shape: f32[1,8], index: 5, kind: input, shape index: {}]
  %s6 = inlined_call_operand.vmem [shape: f32[256,8], index: 6, kind: output, shape index: {}]
  %s7 = sld [smem:[#allocation0]]
  $region38: #{gcn_layer_forward.1} parent=0
    _
  %s9 = ssub.s32 1, %s7
  %s10 = scalar_select 0, %s9, %s7
  $region1: #{gcn_layer_forward.1} parent=0
    #allocation2 [shape = 'u8[262144]{0}', space=vmem, size = 0x40000, scoped, tag = 'input window, operand 1, single buffered']
    #allocation3 [shape = 's32[1]{0}', space=sflag, size = 0x4, scoped, tag = 'scoped memory for gcn_layer_forward.1']
    %11 = vsyncpa [#allocation3], 0
    // Predicated region
    $region2: #{gcn_layer_forward.1} parent=1 // pred_check
      _
    $region3: #{gcn_layer_forward.1} parent=1 // pred_check_branch
      %13 = sbr.rel (0) target = $region5
    $region4: #{gcn_layer_forward.1} parent=1 // pred_region
      _
    $region5: #{gcn_layer_forward.1} parent=1 // pred_fallthru
      _
    // Predicated region
    $region6: #{gcn_layer_forward.1} parent=1 // pred_check
      _
    $region7: #{gcn_layer_forward.1} parent=1 // pred_check_branch
      %15 = sbr.rel (0) target = $region9
    $region8: #{gcn_layer_forward.1} parent=1 // pred_region
      %s17 = ssub.s32 8192, 8192
      %18 = vsyncadd [#allocation3], %s17
      %s19 = sshll.u32 [#allocation2], 4
      %s20 = int_to_ptr.vmem [resolvable:$true] %s19
      %25 = dma.hbm_to_vmem [thread:$0]  %s1, 8192, %s20, [#allocation3], 256, 256, 16
    $region9: #{gcn_layer_forward.1} parent=1 // pred_fallthru
      _
    // Predicated region
    $region10: #{gcn_layer_forward.1} parent=1 // pred_check
      _
    $region11: #{gcn_layer_forward.1} parent=1 // pred_check_branch
      %27 = sbr.rel (0) target = $region13
    $region12: #{gcn_layer_forward.1} parent=1 // pred_region
      _
    $region13: #{gcn_layer_forward.1} parent=1 // pred_fallthru
      _
    // Predicated region
    $region14: #{gcn_layer_forward.1} parent=1 // pred_check
      _
    $region15: #{gcn_layer_forward.1} parent=1 // pred_check_branch
      %29 = sbr.rel (0) target = $region17
    $region16: #{gcn_layer_forward.1} parent=1 // pred_region
      _
    $region17: #{gcn_layer_forward.1} parent=1 // pred_fallthru
      _
    // Predicated region
    $region18: #{gcn_layer_forward.1} parent=1 // pred_check
      _
    $region19: #{gcn_layer_forward.1} parent=1 // pred_check_branch
      %31 = sbr.rel (0) target = $region21
    $region20: #{gcn_layer_forward.1} parent=1 // pred_region
      _
    $region21: #{gcn_layer_forward.1} parent=1 // pred_fallthru
      _
    // Predicated region
    $region22: #{gcn_layer_forward.1} parent=1 // pred_check
      _
    $region23: #{gcn_layer_forward.1} parent=1 // pred_check_branch
      %33 = sbr.rel (0) target = $region25
    $region24: #{gcn_layer_forward.1} parent=1 // pred_region
      _
    $region25: #{gcn_layer_forward.1} parent=1 // pred_fallthru
      _
    // Predicated region
    $region26: #{gcn_layer_forward.1} parent=1 // pred_check
      _
    $region27: #{gcn_layer_forward.1} parent=1 // pred_check_branch
      %35 = sbr.rel (0) target = $region29
    $region28: #{gcn_layer_forward.1} parent=1 // pred_region
      %36 = dma.done [#allocation3], 8192
    $region29: #{gcn_layer_forward.1} parent=1 // pred_fallthru
      _
    %v37 = vld [vmem:[%s0] sm:$0xff]
    %v38 = vld [vmem:[%s0 + $0x8] sm:$0xff]
    %v39 = vld [vmem:[%s0 + $0x10] sm:$0xff]
    %v40 = vld [vmem:[%s0 + $0x18] sm:$0xff]
    %v41 = vld [vmem:[%s0 + $0x20] sm:$0xff]
    %v42 = vld [vmem:[%s0 + $0x28] sm:$0xff]
    %v43 = vld [vmem:[%s0 + $0x30] sm:$0xff]
    %v44 = vld [vmem:[%s0 + $0x38] sm:$0xff]
    %v45 = vld [vmem:[%s0 + $0x40] sm:$0xff]
    %v46 = vld [vmem:[%s0 + $0x48] sm:$0xff]
    %v47 = vld [vmem:[%s0 + $0x50] sm:$0xff]
    %v48 = vld [vmem:[%s0 + $0x58] sm:$0xff]
    %v49 = vld [vmem:[%s0 + $0x60] sm:$0xff]
    %v50 = vld [vmem:[%s0 + $0x68] sm:$0xff]
    %v51 = vld [vmem:[%s0 + $0x70] sm:$0xff]
    %v52 = vld [vmem:[%s0 + $0x78] sm:$0xff]
    %v53 = vld [vmem:[%s0 + $0x80] sm:$0xff]
    %v54 = vld [vmem:[%s0 + $0x88] sm:$0xff]
    %v55 = vld [vmem:[%s0 + $0x90] sm:$0xff]
    %v56 = vld [vmem:[%s0 + $0x98] sm:$0xff]
    %v57 = vld [vmem:[%s0 + $0xa0] sm:$0xff]
    %v58 = vld [vmem:[%s0 + $0xa8] sm:$0xff]
    %v59 = vld [vmem:[%s0 + $0xb0] sm:$0xff]
    %v60 = vld [vmem:[%s0 + $0xb8] sm:$0xff]
    %v61 = vld [vmem:[%s0 + $0xc0] sm:$0xff]
    %v62 = vld [vmem:[%s0 + $0xc8] sm:$0xff]
    %v63 = vld [vmem:[%s0 + $0xd0] sm:$0xff]
    %v64 = vld [vmem:[%s0 + $0xd8] sm:$0xff]
    %v65 = vld [vmem:[%s0 + $0xe0] sm:$0xff]
    %v66 = vld [vmem:[%s0 + $0xe8] sm:$0xff]
    %v67 = vld [vmem:[%s0 + $0xf0] sm:$0xff]
    %v68 = vld [vmem:[%s0 + $0xf8] sm:$0xff]
    %v69 = vld [vmem:[#allocation2] sm:$0xff]
    %v70 = vld [vmem:[#allocation2 + $0x8] sm:$0xff]
    %v71 = vld [vmem:[#allocation2 + $0x10] sm:$0xff]
    %v72 = vld [vmem:[#allocation2 + $0x18] sm:$0xff]
    %v73 = vld [vmem:[#allocation2 + $0x20] sm:$0xff]
    %v74 = vld [vmem:[#allocation2 + $0x28] sm:$0xff]
    %v75 = vld [vmem:[#allocation2 + $0x30] sm:$0xff]
    %v76 = vld [vmem:[#allocation2 + $0x38] sm:$0xff]
    %v77 = vld [vmem:[#allocation2 + $0x40] sm:$0xff]
    %v78 = vld [vmem:[#allocation2 + $0x48] sm:$0xff]
    %v79 = vld [vmem:[#allocation2 + $0x50] sm:$0xff]
    %v80 = vld [vmem:[#allocation2 + $0x58] sm:$0xff]
    %v81 = vld [vmem:[#allocation2 + $0x60] sm:$0xff]
    %v82 = vld [vmem:[#allocation2 + $0x68] sm:$0xff]
    %v83 = vld [vmem:[#allocation2 + $0x70] sm:$0xff]
    %v84 = vld [vmem:[#allocation2 + $0x78] sm:$0xff]
    %v85 = vld [vmem:[#allocation2 + $0x80] sm:$0xff]
    %v86 = vld [vmem:[#allocation2 + $0x88] sm:$0xff]
    %v87 = vld [vmem:[#allocation2 + $0x90] sm:$0xff]
    %v88 = vld [vmem:[#allocation2 + $0x98] sm:$0xff]
    %v89 = vld [vmem:[#allocation2 + $0xa0] sm:$0xff]
    %v90 = vld [vmem:[#allocation2 + $0xa8] sm:$0xff]
    %v91 = vld [vmem:[#allocation2 + $0xb0] sm:$0xff]
    %v92 = vld [vmem:[#allocation2 + $0xb8] sm:$0xff]
    %v93 = vld [vmem:[#allocation2 + $0xc0] sm:$0xff]
    %v94 = vld [vmem:[#allocation2 + $0xc8] sm:$0xff]
    %v95 = vld [vmem:[#allocation2 + $0xd0] sm:$0xff]
    %v96 = vld [vmem:[#allocation2 + $0xd8] sm:$0xff]
    %v97 = vld [vmem:[#allocation2 + $0xe0] sm:$0xff]
    %v98 = vld [vmem:[#allocation2 + $0xe8] sm:$0xff]
    %v99 = vld [vmem:[#allocation2 + $0xf0] sm:$0xff]
    %v100 = vld [vmem:[#allocation2 + $0xf8] sm:$0xff]
    %v101 = vld [vmem:[#allocation2 + $0x100] sm:$0xff]
    %v102 = vld [vmem:[#allocation2 + $0x108] sm:$0xff]
    %v103 = vld [vmem:[#allocation2 + $0x110] sm:$0xff]
    %v104 = vld [vmem:[#allocation2 + $0x118] sm:$0xff]
    %v105 = vld [vmem:[#allocation2 + $0x120] sm:$0xff]
    %v106 = vld [vmem:[#allocation2 + $0x128] sm:$0xff]
    %v107 = vld [vmem:[#allocation2 + $0x130] sm:$0xff]
    %v108 = vld [vmem:[#allocation2 + $0x138] sm:$0xff]
    %v109 = vld [vmem:[#allocation2 + $0x140] sm:$0xff]
    %v110 = vld [vmem:[#allocation2 + $0x148] sm:$0xff]
    %v111 = vld [vmem:[#allocation2 + $0x150] sm:$0xff]
    %v112 = vld [vmem:[#allocation2 + $0x158] sm:$0xff]
    %v113 = vld [vmem:[#allocation2 + $0x160] sm:$0xff]
    %v114 = vld [vmem:[#allocation2 + $0x168] sm:$0xff]
    %v115 = vld [vmem:[#allocation2 + $0x170] sm:$0xff]
    %v116 = vld [vmem:[#allocation2 + $0x178] sm:$0xff]
    %v117 = vld [vmem:[#allocation2 + $0x180] sm:$0xff]
    %v118 = vld [vmem:[#allocation2 + $0x188] sm:$0xff]
    %v119 = vld [vmem:[#allocation2 + $0x190] sm:$0xff]
    %v120 = vld [vmem:[#allocation2 + $0x198] sm:$0xff]
    %v121 = vld [vmem:[#allocation2 + $0x1a0] sm:$0xff]
    %v122 = vld [vmem:[#allocation2 + $0x1a8] sm:$0xff]
    %v123 = vld [vmem:[#allocation2 + $0x1b0] sm:$0xff]
    %v124 = vld [vmem:[#allocation2 + $0x1b8] sm:$0xff]
    %v125 = vld [vmem:[#allocation2 + $0x1c0] sm:$0xff]
    %v126 = vld [vmem:[#allocation2 + $0x1c8] sm:$0xff]
    %v127 = vld [vmem:[#allocation2 + $0x1d0] sm:$0xff]
    %v128 = vld [vmem:[#allocation2 + $0x1d8] sm:$0xff]
    %v129 = vld [vmem:[#allocation2 + $0x1e0] sm:$0xff]
    %v130 = vld [vmem:[#allocation2 + $0x1e8] sm:$0xff]
    %v131 = vld [vmem:[#allocation2 + $0x1f0] sm:$0xff]
    %v132 = vld [vmem:[#allocation2 + $0x1f8] sm:$0xff]
    %133 = vxpose.xlu0.b32.start [1/16] %v37, 128
    %134 = vxpose.xlu0.b32.cont [2/16] %v38, 128
    %135 = vxpose.xlu0.b32.cont [3/16] %v39, 128
    %136 = vxpose.xlu0.b32.cont [4/16] %v40, 128
    %137 = vxpose.xlu0.b32.cont [5/16] %v41, 128
    %138 = vxpose.xlu0.b32.cont [6/16] %v42, 128
    %139 = vxpose.xlu0.b32.cont [7/16] %v43, 128
    %140 = vxpose.xlu0.b32.cont [8/16] %v44, 128
    %141 = vxpose.xlu0.b32.cont [9/16] %v45, 128
    %142 = vxpose.xlu0.b32.cont [10/16] %v46, 128
    %143 = vxpose.xlu0.b32.cont [11/16] %v47, 128
    %144 = vxpose.xlu0.b32.cont [12/16] %v48, 128
    %145 = vxpose.xlu0.b32.cont [13/16] %v49, 128
    %146 = vxpose.xlu0.b32.cont [14/16] %v50, 128
    %147 = vxpose.xlu0.b32.cont [15/16] %v51, 128
    %148 = vxpose.xlu0.b32.end [16/16] %v52, 128
    %v149 = vpop.trf.xlu0
    %v150 = vpop.trf.xlu0
    %v151 = vpop.trf.xlu0
    %v152 = vpop.trf.xlu0
    %v153 = vpop.trf.xlu0
    %v154 = vpop.trf.xlu0
    %v155 = vpop.trf.xlu0
    %v156 = vpop.trf.xlu0
    %v157 = vpop.trf.xlu0
    %v158 = vpop.trf.xlu0
    %v159 = vpop.trf.xlu0
    %v160 = vpop.trf.xlu0
    %v161 = vpop.trf.xlu0
    %v162 = vpop.trf.xlu0
    %v163 = vpop.trf.xlu0
    %v164 = vpop.trf.xlu0
    %165 = vxpose.xlu0.b32.start [1/16] %v53, 128
    %166 = vxpose.xlu0.b32.cont [2/16] %v54, 128
    %167 = vxpose.xlu0.b32.cont [3/16] %v55, 128
    %168 = vxpose.xlu0.b32.cont [4/16] %v56, 128
    %169 = vxpose.xlu0.b32.cont [5/16] %v57, 128
    %170 = vxpose.xlu0.b32.cont [6/16] %v58, 128
    %171 = vxpose.xlu0.b32.cont [7/16] %v59, 128
    %172 = vxpose.xlu0.b32.cont [8/16] %v60, 128
    %173 = vxpose.xlu0.b32.cont [9/16] %v61, 128
    %174 = vxpose.xlu0.b32.cont [10/16] %v62, 128
    %175 = vxpose.xlu0.b32.cont [11/16] %v63, 128
    %176 = vxpose.xlu0.b32.cont [12/16] %v64, 128
    %177 = vxpose.xlu0.b32.cont [13/16] %v65, 128
    %178 = vxpose.xlu0.b32.cont [14/16] %v66, 128
    %179 = vxpose.xlu0.b32.cont [15/16] %v67, 128
    %180 = vxpose.xlu0.b32.end [16/16] %v68, 128
    %v181 = vpop.trf.xlu0
    %v182 = vpop.trf.xlu0
    %v183 = vpop.trf.xlu0
    %v184 = vpop.trf.xlu0
    %v185 = vpop.trf.xlu0
    %v186 = vpop.trf.xlu0
    %v187 = vpop.trf.xlu0
    %v188 = vpop.trf.xlu0
    %v189 = vpop.trf.xlu0
    %v190 = vpop.trf.xlu0
    %v191 = vpop.trf.xlu0
    %v192 = vpop.trf.xlu0
    %v193 = vpop.trf.xlu0
    %v194 = vpop.trf.xlu0
    %v195 = vpop.trf.xlu0
    %v196 = vpop.trf.xlu0
    %197 = vmatprep.subr.mxu0 %v70
    %198 = vmatpush1.msra.mxu0 %v69
    %199 = vmatprep.subr.mxu0 %v72
    %200 = vmatpush1.msra.mxu0 %v71
    %201 = vmatprep.subr.mxu0 %v74
    %202 = vmatpush1.msra.mxu0 %v73
    %203 = vmatprep.subr.mxu0 %v76
    %204 = vmatpush1.msra.mxu0 %v75
    %205 = vmatprep.subr.mxu0 %v78
    %206 = vmatpush1.msra.mxu0 %v77
    %207 = vmatprep.subr.mxu0 %v80
    %208 = vmatpush1.msra.mxu0 %v79
    %209 = vmatprep.subr.mxu0 %v82
    %210 = vmatpush1.msra.mxu0 %v81
    %211 = vmatprep.subr.mxu0 %v84
    %212 = vmatpush1.msra.mxu0 %v83
    %213 = vmatprep.subr.mxu0 %v86
    %214 = vmatpush1.msra.mxu0 %v85
    %215 = vmatprep.subr.mxu0 %v88
    %216 = vmatpush1.msra.mxu0 %v87
    %217 = vmatprep.subr.mxu0 %v90
    %218 = vmatpush1.msra.mxu0 %v89
    %219 = vmatprep.subr.mxu0 %v92
    %220 = vmatpush1.msra.mxu0 %v91
    %221 = vmatprep.subr.mxu0 %v94
    %222 = vmatpush1.msra.mxu0 %v93
    %223 = vmatprep.subr.mxu0 %v96
    %224 = vmatpush1.msra.mxu0 %v95
    %225 = vmatprep.subr.mxu0 %v98
    %226 = vmatpush1.msra.mxu0 %v97
    %227 = vmatprep.subr.mxu0 %v100
    %228 = vmatpush1.msra.mxu0 %v99
    %229 = vmatprep.subr.mxu0 %v102
    %230 = vmatpush1.msra.mxu0 %v101
    %231 = vmatprep.subr.mxu0 %v104
    %232 = vmatpush1.msra.mxu0 %v103
    %233 = vmatprep.subr.mxu0 %v106
    %234 = vmatpush1.msra.mxu0 %v105
    %235 = vmatprep.subr.mxu0 %v108
    %236 = vmatpush1.msra.mxu0 %v107
    %237 = vmatprep.subr.mxu0 %v110
    %238 = vmatpush1.msra.mxu0 %v109
    %239 = vmatprep.subr.mxu0 %v112
    %240 = vmatpush1.msra.mxu0 %v111
    %241 = vmatprep.subr.mxu0 %v114
    %242 = vmatpush1.msra.mxu0 %v113
    %243 = vmatprep.subr.mxu0 %v116
    %244 = vmatpush1.msra.mxu0 %v115
    %245 = vmatprep.subr.mxu0 %v118
    %246 = vmatpush1.msra.mxu0 %v117
    %247 = vmatprep.subr.mxu0 %v120
    %248 = vmatpush1.msra.mxu0 %v119
    %249 = vmatprep.subr.mxu0 %v122
    %250 = vmatpush1.msra.mxu0 %v121
    %251 = vmatprep.subr.mxu0 %v124
    %252 = vmatpush1.msra.mxu0 %v123
    %253 = vmatprep.subr.mxu0 %v126
    %254 = vmatpush1.msra.mxu0 %v125
    %255 = vmatprep.subr.mxu0 %v128
    %256 = vmatpush1.msra.mxu0 %v127
    %257 = vmatprep.subr.mxu0 %v130
    %258 = vmatpush1.msra.mxu0 %v129
    %259 = vmatprep.subr.mxu0 %v132
    %260 = vmatpush1.msra.mxu0 %v131
    %261 = vmatprep.mubr.f32.mxu0 %v181
    %262 = vmatmul.mubr.f32.gmra.mrb[0].mxu0 %v149
    %v263 = vpop.f32.mrb[0].mxu0
    %v264 = vadd.f32 0.0, %v263
    %v265 = vpop.f32.mrb[0].mxu0
    %v266 = vadd.f32 0.0, %v265
    %267 = vdwg.mxu0
    %v268 = vld [vmem:[%s2] sm:$0xff]
    %v269 = vld [vmem:[%s2 + $0x8] sm:$0xff]
    %v270 = vld [vmem:[%s2 + $0x10] sm:$0xff]
    %v271 = vld [vmem:[%s2 + $0x18] sm:$0xff]
    %v272 = vld [vmem:[%s3] sm:$0xff]
    %v273 = vld [vmem:[%s3 + $0x8] sm:$0xff]
    %v274 = vld [vmem:[%s3 + $0x10] sm:$0xff]
    %v275 = vld [vmem:[%s3 + $0x18] sm:$0xff]
    %277 = vset.pattern.permute.xlu0 0
    %278 = vperm.xlu0 %277, %v272
    %v279 = vpop.permute.xlu0 %278
    %282 = vset.pattern.permute.xlu0 0
    %283 = vperm.xlu0 %282, %v273
    %v284 = vpop.permute.xlu0 %283
    %287 = vset.pattern.permute.xlu0 0
    %288 = vperm.xlu0 %287, %v274
    %v289 = vpop.permute.xlu0 %288
    %292 = vset.pattern.permute.xlu0 0
    %293 = vperm.xlu0 %292, %v275
    %v294 = vpop.permute.xlu0 %293
    %vm296 = vcmask 31744
    %v298 = vsel %vm296, %v268, 0
    %v301 = vsel %vm296, %v269, 0
    %v304 = vsel %vm296, %v270, 0
    %v307 = vsel %vm296, %v271, 0
    %vm309 = vcmask 1043456
    %v311 = vsel %vm309, %v264, 0
    %v314 = vsel %vm309, %v266, 0
    %316 = vmatprep.subr.mxu0 %v314
    %317 = vmatpush1.msra.mxu0 %v311
    %318 = vmatprep.subr.mxu0 0.0
    %319 = vmatpush1.msra.mxu0 0.0
    %320 = vmatprep.subr.mxu0 0.0
    %321 = vmatpush1.msra.mxu0 0.0
    %322 = vmatprep.subr.mxu0 0.0
    %323 = vmatpush1.msra.mxu0 0.0
    %324 = vmatprep.subr.mxu0 0.0
    %325 = vmatpush1.msra.mxu0 0.0
    %326 = vmatprep.subr.mxu0 0.0
    %327 = vmatpush1.msra.mxu0 0.0
    %328 = vmatprep.subr.mxu0 0.0
    %329 = vmatpush1.msra.mxu0 0.0
    %330 = vmatprep.subr.mxu0 0.0
    %331 = vmatpush1.msra.mxu0 0.0
    %332 = vmatprep.subr.mxu0 0.0
    %333 = vmatpush1.msra.mxu0 0.0
    %334 = vmatprep.subr.mxu0 0.0
    %335 = vmatpush1.msra.mxu0 0.0
    %336 = vmatprep.subr.mxu0 0.0
    %337 = vmatpush1.msra.mxu0 0.0
    %338 = vmatprep.subr.mxu0 0.0
    %339 = vmatpush1.msra.mxu0 0.0
    %340 = vmatprep.subr.mxu0 0.0
    %341 = vmatpush1.msra.mxu0 0.0
    %342 = vmatprep.subr.mxu0 0.0
    %343 = vmatpush1.msra.mxu0 0.0
    %344 = vmatprep.subr.mxu0 0.0
    %345 = vmatpush1.msra.mxu0 0.0
    %346 = vmatprep.subr.mxu0 0.0
    %347 = vmatpush1.msra.mxu0 0.0
    %348 = vmatprep.subr.mxu0 0.0
    %349 = vmatpush1.msra.mxu0 0.0
    %350 = vmatprep.subr.mxu0 0.0
    %351 = vmatpush1.msra.mxu0 0.0
    %352 = vmatprep.subr.mxu0 0.0
    %353 = vmatpush1.msra.mxu0 0.0
    %354 = vmatprep.subr.mxu0 0.0
    %355 = vmatpush1.msra.mxu0 0.0
    %356 = vmatprep.subr.mxu0 0.0
    %357 = vmatpush1.msra.mxu0 0.0
    %358 = vmatprep.subr.mxu0 0.0
    %359 = vmatpush1.msra.mxu0 0.0
    %360 = vmatprep.subr.mxu0 0.0
    %361 = vmatpush1.msra.mxu0 0.0
    %362 = vmatprep.subr.mxu0 0.0
    %363 = vmatpush1.msra.mxu0 0.0
    %364 = vmatprep.subr.mxu0 0.0
    %365 = vmatpush1.msra.mxu0 0.0
    %366 = vmatprep.subr.mxu0 0.0
    %367 = vmatpush1.msra.mxu0 0.0
    %368 = vmatprep.subr.mxu0 0.0
    %369 = vmatpush1.msra.mxu0 0.0
    %370 = vmatprep.subr.mxu0 0.0
    %371 = vmatpush1.msra.mxu0 0.0
    %372 = vmatprep.subr.mxu0 0.0
    %373 = vmatpush1.msra.mxu0 0.0
    %374 = vmatprep.subr.mxu0 0.0
    %375 = vmatpush1.msra.mxu0 0.0
    %376 = vmatprep.subr.mxu0 0.0
    %377 = vmatpush1.msra.mxu0 0.0
    %378 = vmatprep.subr.mxu0 0.0
    %379 = vmatpush1.msra.mxu0 0.0
    %380 = vmatprep.mubr.f32.mxu0 0.0
    %381 = vmatmul.mubr.f32.gmra.mrb[0].mxu0 %v298
    %v382 = vpop.f32.mrb[0].mxu0
    %v383 = vadd.f32 %v279, %v382
    %v384 = vpop.f32.mrb[0].mxu0
    %v385 = vadd.f32 %v279, %v384
    %386 = vmatprep.mubr.f32.mxu0 0.0
    %387 = vmatmul.mubr.f32.gmra.mrb[0].mxu0 %v301
    %v388 = vpop.f32.mrb[0].mxu0
    %v389 = vadd.f32 %v284, %v388
    %v390 = vpop.f32.mrb[0].mxu0
    %v391 = vadd.f32 %v284, %v390
    %392 = vmatprep.mubr.f32.mxu0 0.0
    %393 = vmatmul.mubr.f32.gmra.mrb[0].mxu0 %v304
    %v394 = vpop.f32.mrb[0].mxu0
    %v395 = vadd.f32 %v289, %v394
    %v396 = vpop.f32.mrb[0].mxu0
    %v397 = vadd.f32 %v289, %v396
    %398 = vmatprep.mubr.f32.mxu0 0.0
    %399 = vmatmul.mubr.f32.gmra.mrb[0].mxu0 %v307
    %v400 = vpop.f32.mrb[0].mxu0
    %v401 = vadd.f32 %v294, %v400
    %v402 = vpop.f32.mrb[0].mxu0
    %v403 = vadd.f32 %v294, %v402
    %404 = vdwg.mxu0
    %v405 = vmax.f32 %v383, 0.0
    %v406 = vmax.f32 %v385, 0.0
    %v407 = vmax.f32 %v389, 0.0
    %v408 = vmax.f32 %v391, 0.0
    %v409 = vmax.f32 %v395, 0.0
    %v410 = vmax.f32 %v397, 0.0
    %v411 = vmax.f32 %v401, 0.0
    %v412 = vmax.f32 %v403, 0.0
    %v413 = vld [vmem:[%s4] sm:$0xff]
    %vm414 = vcmask 261120
    %v416 = vsel %vm414, %v413, 0
    %418 = vmatprep.subr.mxu0 %v406
    %419 = vmatpush1.msra.mxu0 %v405
    %420 = vmatprep.subr.mxu0 %v408
    %421 = vmatpush1.msra.mxu0 %v407
    %422 = vmatprep.subr.mxu0 %v410
    %423 = vmatpush1.msra.mxu0 %v409
    %424 = vmatprep.subr.mxu0 %v412
    %425 = vmatpush1.msra.mxu0 %v411
    %426 = vmatprep.subr.mxu0 0.0
    %427 = vmatpush1.msra.mxu0 0.0
    %428 = vmatprep.subr.mxu0 0.0
    %429 = vmatpush1.msra.mxu0 0.0
    %430 = vmatprep.subr.mxu0 0.0
    %431 = vmatpush1.msra.mxu0 0.0
    %432 = vmatprep.subr.mxu0 0.0
    %433 = vmatpush1.msra.mxu0 0.0
    %434 = vmatprep.subr.mxu0 0.0
    %435 = vmatpush1.msra.mxu0 0.0
    %436 = vmatprep.subr.mxu0 0.0
    %437 = vmatpush1.msra.mxu0 0.0
    %438 = vmatprep.subr.mxu0 0.0
    %439 = vmatpush1.msra.mxu0 0.0
    %440 = vmatprep.subr.mxu0 0.0
    %441 = vmatpush1.msra.mxu0 0.0
    %442 = vmatprep.subr.mxu0 0.0
    %443 = vmatpush1.msra.mxu0 0.0
    %444 = vmatprep.subr.mxu0 0.0
    %445 = vmatpush1.msra.mxu0 0.0
    %446 = vmatprep.subr.mxu0 0.0
    %447 = vmatpush1.msra.mxu0 0.0
    %448 = vmatprep.subr.mxu0 0.0
    %449 = vmatpush1.msra.mxu0 0.0
    %450 = vmatprep.subr.mxu0 0.0
    %451 = vmatpush1.msra.mxu0 0.0
    %452 = vmatprep.subr.mxu0 0.0
    %453 = vmatpush1.msra.mxu0 0.0
    %454 = vmatprep.subr.mxu0 0.0
    %455 = vmatpush1.msra.mxu0 0.0
    %456 = vmatprep.subr.mxu0 0.0
    %457 = vmatpush1.msra.mxu0 0.0
    %458 = vmatprep.subr.mxu0 0.0
    %459 = vmatpush1.msra.mxu0 0.0
    %460 = vmatprep.subr.mxu0 0.0
    %461 = vmatpush1.msra.mxu0 0.0
    %462 = vmatprep.subr.mxu0 0.0
    %463 = vmatpush1.msra.mxu0 0.0
    %464 = vmatprep.subr.mxu0 0.0
    %465 = vmatpush1.msra.mxu0 0.0
    %466 = vmatprep.subr.mxu0 0.0
    %467 = vmatpush1.msra.mxu0 0.0
    %468 = vmatprep.subr.mxu0 0.0
    %469 = vmatpush1.msra.mxu0 0.0
    %470 = vmatprep.subr.mxu0 0.0
    %471 = vmatpush1.msra.mxu0 0.0
    %472 = vmatprep.subr.mxu0 0.0
    %473 = vmatpush1.msra.mxu0 0.0
    %474 = vmatprep.subr.mxu0 0.0
    %475 = vmatpush1.msra.mxu0 0.0
    %476 = vmatprep.subr.mxu0 0.0
    %477 = vmatpush1.msra.mxu0 0.0
    %478 = vmatprep.subr.mxu0 0.0
    %479 = vmatpush1.msra.mxu0 0.0
    %480 = vmatprep.subr.mxu0 0.0
    %481 = vmatpush1.msra.mxu0 0.0
    %482 = vmatprep.mubr.f32.mxu0 0.0
    %483 = vmatmul.mubr.f32.gmra.mrb[0].mxu0 %v416
    %v484 = vpop.f32.mrb[0].mxu0
    %v485 = vadd.f32 0.0, %v484
    %v486 = vpop.f32.mrb[0].mxu0
    %v487 = vadd.f32 0.0, %v486
    %488 = vdwg.mxu0
    %v489 = vld [vmem:[%s5] sm:$0x1]
    %v491 = vlaneseq
    %v492 = vshrl.u32 %v491, 7
    %v493 = vsub.s32 0, %v492
    %v494 = vrot.slane %v489, %v493
    %496 = vxpose.xlu0.b32.start [1/16] %v69, 128
    %497 = vxpose.xlu0.b32.cont [2/16] %v71, 128
    %498 = vxpose.xlu0.b32.cont [3/16] %v73, 128
    %499 = vxpose.xlu0.b32.cont [4/16] %v75, 128
    %500 = vxpose.xlu0.b32.cont [5/16] %v77, 128
    %501 = vxpose.xlu0.b32.cont [6/16] %v79, 128
    %502 = vxpose.xlu0.b32.cont [7/16] %v81, 128
    %503 = vxpose.xlu0.b32.cont [8/16] %v83, 128
    %504 = vxpose.xlu0.b32.cont [9/16] %v85, 128
    %505 = vxpose.xlu0.b32.cont [10/16] %v87, 128
    %506 = vxpose.xlu0.b32.cont [11/16] %v89, 128
    %507 = vxpose.xlu0.b32.cont [12/16] %v91, 128
    %508 = vxpose.xlu0.b32.cont [13/16] %v93, 128
    %509 = vxpose.xlu0.b32.cont [14/16] %v95, 128
    %510 = vxpose.xlu0.b32.cont [15/16] %v97, 128
    %511 = vxpose.xlu0.b32.end [16/16] %v99, 128
    %v512 = vpop.trf.xlu0
    %v513 = vpop.trf.xlu0
    %v514 = vpop.trf.xlu0
    %v515 = vpop.trf.xlu0
    %v516 = vpop.trf.xlu0
    %v517 = vpop.trf.xlu0
    %v518 = vpop.trf.xlu0
    %v519 = vpop.trf.xlu0
    %v520 = vpop.trf.xlu0
    %v521 = vpop.trf.xlu0
    %v522 = vpop.trf.xlu0
    %v523 = vpop.trf.xlu0
    %v524 = vpop.trf.xlu0
    %v525 = vpop.trf.xlu0
    %v526 = vpop.trf.xlu0
    %v527 = vpop.trf.xlu0
    %528 = vxpose.xlu0.b32.start [1/16] %v70, 128
    %529 = vxpose.xlu0.b32.cont [2/16] %v72, 128
    %530 = vxpose.xlu0.b32.cont [3/16] %v74, 128
    %531 = vxpose.xlu0.b32.cont [4/16] %v76, 128
    %532 = vxpose.xlu0.b32.cont [5/16] %v78, 128
    %533 = vxpose.xlu0.b32.cont [6/16] %v80, 128
    %534 = vxpose.xlu0.b32.cont [7/16] %v82, 128
    %535 = vxpose.xlu0.b32.cont [8/16] %v84, 128
    %536 = vxpose.xlu0.b32.cont [9/16] %v86, 128
    %537 = vxpose.xlu0.b32.cont [10/16] %v88, 128
    %538 = vxpose.xlu0.b32.cont [11/16] %v90, 128
    %539 = vxpose.xlu0.b32.cont [12/16] %v92, 128
    %540 = vxpose.xlu0.b32.cont [13/16] %v94, 128
    %541 = vxpose.xlu0.b32.cont [14/16] %v96, 128
    %542 = vxpose.xlu0.b32.cont [15/16] %v98, 128
    %543 = vxpose.xlu0.b32.end [16/16] %v100, 128
    %v544 = vpop.trf.xlu0
    %v545 = vpop.trf.xlu0
    %v546 = vpop.trf.xlu0
    %v547 = vpop.trf.xlu0
    %v548 = vpop.trf.xlu0
    %v549 = vpop.trf.xlu0
    %v550 = vpop.trf.xlu0
    %v551 = vpop.trf.xlu0
    %v552 = vpop.trf.xlu0
    %v553 = vpop.trf.xlu0
    %v554 = vpop.trf.xlu0
    %v555 = vpop.trf.xlu0
    %v556 = vpop.trf.xlu0
    %v557 = vpop.trf.xlu0
    %v558 = vpop.trf.xlu0
    %v559 = vpop.trf.xlu0
    %560 = vxpose.xlu0.b32.start [1/16] %v101, 128
    %561 = vxpose.xlu0.b32.cont [2/16] %v103, 128
    %562 = vxpose.xlu0.b32.cont [3/16] %v105, 128
    %563 = vxpose.xlu0.b32.cont [4/16] %v107, 128
    %564 = vxpose.xlu0.b32.cont [5/16] %v109, 128
    %565 = vxpose.xlu0.b32.cont [6/16] %v111, 128
    %566 = vxpose.xlu0.b32.cont [7/16] %v113, 128
    %567 = vxpose.xlu0.b32.cont [8/16] %v115, 128
    %568 = vxpose.xlu0.b32.cont [9/16] %v117, 128
    %569 = vxpose.xlu0.b32.cont [10/16] %v119, 128
    %570 = vxpose.xlu0.b32.cont [11/16] %v121, 128
    %571 = vxpose.xlu0.b32.cont [12/16] %v123, 128
    %572 = vxpose.xlu0.b32.cont [13/16] %v125, 128
    %573 = vxpose.xlu0.b32.cont [14/16] %v127, 128
    %574 = vxpose.xlu0.b32.cont [15/16] %v129, 128
    %575 = vxpose.xlu0.b32.end [16/16] %v131, 128
    %v576 = vpop.trf.xlu0
    %v577 = vpop.trf.xlu0
    %v578 = vpop.trf.xlu0
    %v579 = vpop.trf.xlu0
    %v580 = vpop.trf.xlu0
    %v581 = vpop.trf.xlu0
    %v582 = vpop.trf.xlu0
    %v583 = vpop.trf.xlu0
    %v584 = vpop.trf.xlu0
    %v585 = vpop.trf.xlu0
    %v586 = vpop.trf.xlu0
    %v587 = vpop.trf.xlu0
    %v588 = vpop.trf.xlu0
    %v589 = vpop.trf.xlu0
    %v590 = vpop.trf.xlu0
    %v591 = vpop.trf.xlu0
    %592 = vxpose.xlu0.b32.start [1/16] %v102, 128
    %593 = vxpose.xlu0.b32.cont [2/16] %v104, 128
    %594 = vxpose.xlu0.b32.cont [3/16] %v106, 128
    %595 = vxpose.xlu0.b32.cont [4/16] %v108, 128
    %596 = vxpose.xlu0.b32.cont [5/16] %v110, 128
    %597 = vxpose.xlu0.b32.cont [6/16] %v112, 128
    %598 = vxpose.xlu0.b32.cont [7/16] %v114, 128
    %599 = vxpose.xlu0.b32.cont [8/16] %v116, 128
    %600 = vxpose.xlu0.b32.cont [9/16] %v118, 128
    %601 = vxpose.xlu0.b32.cont [10/16] %v120, 128
    %602 = vxpose.xlu0.b32.cont [11/16] %v122, 128
    %603 = vxpose.xlu0.b32.cont [12/16] %v124, 128
    %604 = vxpose.xlu0.b32.cont [13/16] %v126, 128
    %605 = vxpose.xlu0.b32.cont [14/16] %v128, 128
    %606 = vxpose.xlu0.b32.cont [15/16] %v130, 128
    %607 = vxpose.xlu0.b32.end [16/16] %v132, 128
    %v608 = vpop.trf.xlu0
    %v609 = vpop.trf.xlu0
    %v610 = vpop.trf.xlu0
    %v611 = vpop.trf.xlu0
    %v612 = vpop.trf.xlu0
    %v613 = vpop.trf.xlu0
    %v614 = vpop.trf.xlu0
    %v615 = vpop.trf.xlu0
    %v616 = vpop.trf.xlu0
    %v617 = vpop.trf.xlu0
    %v618 = vpop.trf.xlu0
    %v619 = vpop.trf.xlu0
    %v620 = vpop.trf.xlu0
    %v621 = vpop.trf.xlu0
    %v622 = vpop.trf.xlu0
    %v623 = vpop.trf.xlu0
    %624 = vmatprep.subr.mxu0 %v487
    %625 = vmatpush1.xpose.msra.mxu0 %v485
    %626 = vmatprep.subr.mxu0 0.0
    %627 = vmatpush1.xpose.msra.mxu0 0.0
    %628 = vmatprep.subr.mxu0 0.0
    %629 = vmatpush1.xpose.msra.mxu0 0.0
    %630 = vmatprep.subr.mxu0 0.0
    %631 = vmatpush1.xpose.msra.mxu0 0.0
    %632 = vmatprep.subr.mxu0 0.0
    %633 = vmatpush1.xpose.msra.mxu0 0.0
    %634 = vmatprep.subr.mxu0 0.0
    %635 = vmatpush1.xpose.msra.mxu0 0.0
    %636 = vmatprep.subr.mxu0 0.0
    %637 = vmatpush1.xpose.msra.mxu0 0.0
    %638 = vmatprep.subr.mxu0 0.0
    %639 = vmatpush1.xpose.msra.mxu0 0.0
    %640 = vmatprep.subr.mxu0 0.0
    %641 = vmatpush1.xpose.msra.mxu0 0.0
    %642 = vmatprep.subr.mxu0 0.0
    %643 = vmatpush1.xpose.msra.mxu0 0.0
    %644 = vmatprep.subr.mxu0 0.0
    %645 = vmatpush1.xpose.msra.mxu0 0.0
    %646 = vmatprep.subr.mxu0 0.0
    %647 = vmatpush1.xpose.msra.mxu0 0.0
    %648 = vmatprep.subr.mxu0 0.0
    %649 = vmatpush1.xpose.msra.mxu0 0.0
    %650 = vmatprep.subr.mxu0 0.0
    %651 = vmatpush1.xpose.msra.mxu0 0.0
    %652 = vmatprep.subr.mxu0 0.0
    %653 = vmatpush1.xpose.msra.mxu0 0.0
    %654 = vmatprep.subr.mxu0 0.0
    %655 = vmatpush1.xpose.msra.mxu0 0.0
    %656 = vmatprep.subr.mxu0 0.0
    %657 = vmatpush1.xpose.msra.mxu0 0.0
    %658 = vmatprep.subr.mxu0 0.0
    %659 = vmatpush1.xpose.msra.mxu0 0.0
    %660 = vmatprep.subr.mxu0 0.0
    %661 = vmatpush1.xpose.msra.mxu0 0.0
    %662 = vmatprep.subr.mxu0 0.0
    %663 = vmatpush1.xpose.msra.mxu0 0.0
    %664 = vmatprep.subr.mxu0 0.0
    %665 = vmatpush1.xpose.msra.mxu0 0.0
    %666 = vmatprep.subr.mxu0 0.0
    %667 = vmatpush1.xpose.msra.mxu0 0.0
    %668 = vmatprep.subr.mxu0 0.0
    %669 = vmatpush1.xpose.msra.mxu0 0.0
    %670 = vmatprep.subr.mxu0 0.0
    %671 = vmatpush1.xpose.msra.mxu0 0.0
    %672 = vmatprep.subr.mxu0 0.0
    %673 = vmatpush1.xpose.msra.mxu0 0.0
    %674 = vmatprep.subr.mxu0 0.0
    %675 = vmatpush1.xpose.msra.mxu0 0.0
    %676 = vmatprep.subr.mxu0 0.0
    %677 = vmatpush1.xpose.msra.mxu0 0.0
    %678 = vmatprep.subr.mxu0 0.0
    %679 = vmatpush1.xpose.msra.mxu0 0.0
    %680 = vmatprep.subr.mxu0 0.0
    %681 = vmatpush1.xpose.msra.mxu0 0.0
    %682 = vmatprep.subr.mxu0 0.0
    %683 = vmatpush1.xpose.msra.mxu0 0.0
    %684 = vmatprep.subr.mxu0 0.0
    %685 = vmatpush1.xpose.msra.mxu0 0.0
    %686 = vmatprep.subr.mxu0 0.0
    %687 = vmatpush1.xpose.msra.mxu0 0.0
    %688 = vmatprep.mubr.f32.mxu0 %v576
    %689 = vmatmul.mubr.f32.gmra.mrb[0].mxu0 %v512
    %v690 = vpop.f32.mrb[0].mxu0
    %v691 = vadd.f32 %v494, %v690
    %v692 = vpop.f32.mrb[0].mxu0
    %693 = vmatprep.mubr.f32.mxu0 %v577
    %694 = vmatmul.mubr.f32.gmra.mrb[0].mxu0 %v513
    %v695 = vpop.f32.mrb[0].mxu0
    %v696 = vadd.f32 %v494, %v695
    %v697 = vpop.f32.mrb[0].mxu0
    %698 = vmatprep.mubr.f32.mxu0 %v578
    %699 = vmatmul.mubr.f32.gmra.mrb[0].mxu0 %v514
    %v700 = vpop.f32.mrb[0].mxu0
    %v701 = vadd.f32 %v494, %v700
    %v702 = vpop.f32.mrb[0].mxu0
    %703 = vmatprep.mubr.f32.mxu0 %v579
    %704 = vmatmul.mubr.f32.gmra.mrb[0].mxu0 %v515
    %v705 = vpop.f32.mrb[0].mxu0
    %v706 = vadd.f32 %v494, %v705
    %v707 = vpop.f32.mrb[0].mxu0
    %708 = vmatprep.mubr.f32.mxu0 %v580
    %709 = vmatmul.mubr.f32.gmra.mrb[0].mxu0 %v516
    %v710 = vpop.f32.mrb[0].mxu0
    %v711 = vadd.f32 %v494, %v710
    %v712 = vpop.f32.mrb[0].mxu0
    %713 = vmatprep.mubr.f32.mxu0 %v581
    %714 = vmatmul.mubr.f32.gmra.mrb[0].mxu0 %v517
    %v715 = vpop.f32.mrb[0].mxu0
    %v716 = vadd.f32 %v494, %v715
    %v717 = vpop.f32.mrb[0].mxu0
    %718 = vmatprep.mubr.f32.mxu0 %v582
    %719 = vmatmul.mubr.f32.gmra.mrb[0].mxu0 %v518
    %v720 = vpop.f32.mrb[0].mxu0
    %v721 = vadd.f32 %v494, %v720
    %v722 = vpop.f32.mrb[0].mxu0
    %723 = vmatprep.mubr.f32.mxu0 %v583
    %724 = vmatmul.mubr.f32.gmra.mrb[0].mxu0 %v519
    %v725 = vpop.f32.mrb[0].mxu0
    %v726 = vadd.f32 %v494, %v725
    %v727 = vpop.f32.mrb[0].mxu0
    %728 = vmatprep.mubr.f32.mxu0 %v584
    %729 = vmatmul.mubr.f32.gmra.mrb[0].mxu0 %v520
    %v730 = vpop.f32.mrb[0].mxu0
    %v731 = vadd.f32 %v494, %v730
    %v732 = vpop.f32.mrb[0].mxu0
    %733 = vmatprep.mubr.f32.mxu0 %v585
    %734 = vmatmul.mubr.f32.gmra.mrb[0].mxu0 %v521
    %v735 = vpop.f32.mrb[0].mxu0
    %v736 = vadd.f32 %v494, %v735
    %v737 = vpop.f32.mrb[0].mxu0
    %738 = vmatprep.mubr.f32.mxu0 %v586
    %739 = vmatmul.mubr.f32.gmra.mrb[0].mxu0 %v522
    %v740 = vpop.f32.mrb[0].mxu0
    %v741 = vadd.f32 %v494, %v740
    %v742 = vpop.f32.mrb[0].mxu0
    %743 = vmatprep.mubr.f32.mxu0 %v587
    %744 = vmatmul.mubr.f32.gmra.mrb[0].mxu0 %v523
    %v745 = vpop.f32.mrb[0].mxu0
    %v746 = vadd.f32 %v494, %v745
    %v747 = vpop.f32.mrb[0].mxu0
    %748 = vmatprep.mubr.f32.mxu0 %v588
    %749 = vmatmul.mubr.f32.gmra.mrb[0].mxu0 %v524
    %v750 = vpop.f32.mrb[0].mxu0
    %v751 = vadd.f32 %v494, %v750
    %v752 = vpop.f32.mrb[0].mxu0
    %753 = vmatprep.mubr.f32.mxu0 %v589
    %754 = vmatmul.mubr.f32.gmra.mrb[0].mxu0 %v525
    %v755 = vpop.f32.mrb[0].mxu0
    %v756 = vadd.f32 %v494, %v755
    %v757 = vpop.f32.mrb[0].mxu0
    %758 = vmatprep.mubr.f32.mxu0 %v590
    %759 = vmatmul.mubr.f32.gmra.mrb[0].mxu0 %v526
    %v760 = vpop.f32.mrb[0].mxu0
    %v761 = vadd.f32 %v494, %v760
    %v762 = vpop.f32.mrb[0].mxu0
    %763 = vmatprep.mubr.f32.mxu0 %v591
    %764 = vmatmul.mubr.f32.gmra.mrb[0].mxu0 %v527
    %v765 = vpop.f32.mrb[0].mxu0
    %v766 = vadd.f32 %v494, %v765
    %v767 = vpop.f32.mrb[0].mxu0
    %768 = vmatprep.mubr.f32.mxu0 %v608
    %769 = vmatmul.mubr.f32.gmra.mrb[0].mxu0 %v544
    %v770 = vpop.f32.mrb[0].mxu0
    %v771 = vadd.f32 %v494, %v770
    %v772 = vpop.f32.mrb[0].mxu0
    %773 = vmatprep.mubr.f32.mxu0 %v609
    %774 = vmatmul.mubr.f32.gmra.mrb[0].mxu0 %v545
    %v775 = vpop.f32.mrb[0].mxu0
    %v776 = vadd.f32 %v494, %v775
    %v777 = vpop.f32.mrb[0].mxu0
    %778 = vmatprep.mubr.f32.mxu0 %v610
    %779 = vmatmul.mubr.f32.gmra.mrb[0].mxu0 %v546
    %v780 = vpop.f32.mrb[0].mxu0
    %v781 = vadd.f32 %v494, %v780
    %v782 = vpop.f32.mrb[0].mxu0
    %783 = vmatprep.mubr.f32.mxu0 %v611
    %784 = vmatmul.mubr.f32.gmra.mrb[0].mxu0 %v547
    %v785 = vpop.f32.mrb[0].mxu0
    %v786 = vadd.f32 %v494, %v785
    %v787 = vpop.f32.mrb[0].mxu0
    %788 = vmatprep.mubr.f32.mxu0 %v612
    %789 = vmatmul.mubr.f32.gmra.mrb[0].mxu0 %v548
    %v790 = vpop.f32.mrb[0].mxu0
    %v791 = vadd.f32 %v494, %v790
    %v792 = vpop.f32.mrb[0].mxu0
    %793 = vmatprep.mubr.f32.mxu0 %v613
    %794 = vmatmul.mubr.f32.gmra.mrb[0].mxu0 %v549
    %v795 = vpop.f32.mrb[0].mxu0
    %v796 = vadd.f32 %v494, %v795
    %v797 = vpop.f32.mrb[0].mxu0
    %798 = vmatprep.mubr.f32.mxu0 %v614
    %799 = vmatmul.mubr.f32.gmra.mrb[0].mxu0 %v550
    %v800 = vpop.f32.mrb[0].mxu0
    %v801 = vadd.f32 %v494, %v800
    %v802 = vpop.f32.mrb[0].mxu0
    %803 = vmatprep.mubr.f32.mxu0 %v615
    %804 = vmatmul.mubr.f32.gmra.mrb[0].mxu0 %v551
    %v805 = vpop.f32.mrb[0].mxu0
    %v806 = vadd.f32 %v494, %v805
    %v807 = vpop.f32.mrb[0].mxu0
    %808 = vmatprep.mubr.f32.mxu0 %v616
    %809 = vmatmul.mubr.f32.gmra.mrb[0].mxu0 %v552
    %v810 = vpop.f32.mrb[0].mxu0
    %v811 = vadd.f32 %v494, %v810
    %v812 = vpop.f32.mrb[0].mxu0
    %813 = vmatprep.mubr.f32.mxu0 %v617
    %814 = vmatmul.mubr.f32.gmra.mrb[0].mxu0 %v553
    %v815 = vpop.f32.mrb[0].mxu0
    %v816 = vadd.f32 %v494, %v815
    %v817 = vpop.f32.mrb[0].mxu0
    %818 = vmatprep.mubr.f32.mxu0 %v618
    %819 = vmatmul.mubr.f32.gmra.mrb[0].mxu0 %v554
    %v820 = vpop.f32.mrb[0].mxu0
    %v821 = vadd.f32 %v494, %v820
    %v822 = vpop.f32.mrb[0].mxu0
    %823 = vmatprep.mubr.f32.mxu0 %v619
    %824 = vmatmul.mubr.f32.gmra.mrb[0].mxu0 %v555
    %v825 = vpop.f32.mrb[0].mxu0
    %v826 = vadd.f32 %v494, %v825
    %v827 = vpop.f32.mrb[0].mxu0
    %828 = vmatprep.mubr.f32.mxu0 %v620
    %829 = vmatmul.mubr.f32.gmra.mrb[0].mxu0 %v556
    %v830 = vpop.f32.mrb[0].mxu0
    %v831 = vadd.f32 %v494, %v830
    %v832 = vpop.f32.mrb[0].mxu0
    %833 = vmatprep.mubr.f32.mxu0 %v621
    %834 = vmatmul.mubr.f32.gmra.mrb[0].mxu0 %v557
    %v835 = vpop.f32.mrb[0].mxu0
    %v836 = vadd.f32 %v494, %v835
    %v837 = vpop.f32.mrb[0].mxu0
    %838 = vmatprep.mubr.f32.mxu0 %v622
    %839 = vmatmul.mubr.f32.gmra.mrb[0].mxu0 %v558
    %v840 = vpop.f32.mrb[0].mxu0
    %v841 = vadd.f32 %v494, %v840
    %v842 = vpop.f32.mrb[0].mxu0
    %843 = vmatprep.mubr.f32.mxu0 %v623
    %844 = vmatmul.mubr.f32.gmra.mrb[0].mxu0 %v559
    %v845 = vpop.f32.mrb[0].mxu0
    %v846 = vadd.f32 %v494, %v845
    %v847 = vpop.f32.mrb[0].mxu0
    %848 = vdwg.mxu0
    %vm849 = vcmask 64512
    %850 = vst.msk [vmem:[%s6] sm:$0xff] %vm849, %v691
    %851 = vst.msk [vmem:[%s6 + $0x8] sm:$0xff] %vm849, %v696
    %852 = vst.msk [vmem:[%s6 + $0x10] sm:$0xff] %vm849, %v701
    %853 = vst.msk [vmem:[%s6 + $0x18] sm:$0xff] %vm849, %v706
    %854 = vst.msk [vmem:[%s6 + $0x20] sm:$0xff] %vm849, %v711
    %855 = vst.msk [vmem:[%s6 + $0x28] sm:$0xff] %vm849, %v716
    %856 = vst.msk [vmem:[%s6 + $0x30] sm:$0xff] %vm849, %v721
    %857 = vst.msk [vmem:[%s6 + $0x38] sm:$0xff] %vm849, %v726
    %858 = vst.msk [vmem:[%s6 + $0x40] sm:$0xff] %vm849, %v731
    %859 = vst.msk [vmem:[%s6 + $0x48] sm:$0xff] %vm849, %v736
    %860 = vst.msk [vmem:[%s6 + $0x50] sm:$0xff] %vm849, %v741
    %861 = vst.msk [vmem:[%s6 + $0x58] sm:$0xff] %vm849, %v746
    %862 = vst.msk [vmem:[%s6 + $0x60] sm:$0xff] %vm849, %v751
    %863 = vst.msk [vmem:[%s6 + $0x68] sm:$0xff] %vm849, %v756
    %864 = vst.msk [vmem:[%s6 + $0x70] sm:$0xff] %vm849, %v761
    %865 = vst.msk [vmem:[%s6 + $0x78] sm:$0xff] %vm849, %v766
    %866 = vst.msk [vmem:[%s6 + $0x80] sm:$0xff] %vm849, %v771
    %867 = vst.msk [vmem:[%s6 + $0x88] sm:$0xff] %vm849, %v776
    %868 = vst.msk [vmem:[%s6 + $0x90] sm:$0xff] %vm849, %v781
    %869 = vst.msk [vmem:[%s6 + $0x98] sm:$0xff] %vm849, %v786
    %870 = vst.msk [vmem:[%s6 + $0xa0] sm:$0xff] %vm849, %v791
    %871 = vst.msk [vmem:[%s6 + $0xa8] sm:$0xff] %vm849, %v796
    %872 = vst.msk [vmem:[%s6 + $0xb0] sm:$0xff] %vm849, %v801
    %873 = vst.msk [vmem:[%s6 + $0xb8] sm:$0xff] %vm849, %v806
    %874 = vst.msk [vmem:[%s6 + $0xc0] sm:$0xff] %vm849, %v811
    %875 = vst.msk [vmem:[%s6 + $0xc8] sm:$0xff] %vm849, %v816
    %876 = vst.msk [vmem:[%s6 + $0xd0] sm:$0xff] %vm849, %v821
    %877 = vst.msk [vmem:[%s6 + $0xd8] sm:$0xff] %vm849, %v826
    %878 = vst.msk [vmem:[%s6 + $0xe0] sm:$0xff] %vm849, %v831
    %879 = vst.msk [vmem:[%s6 + $0xe8] sm:$0xff] %vm849, %v836
    %880 = vst.msk [vmem:[%s6 + $0xf0] sm:$0xff] %vm849, %v841
    %881 = vst.msk [vmem:[%s6 + $0xf8] sm:$0xff] %vm849, %v846
    // Predicated region
    $region30: #{gcn_layer_forward.1} parent=1 // pred_check
      _
    $region31: #{gcn_layer_forward.1} parent=1 // pred_check_branch
      %883 = sbr.rel (0) target = $region33
    $region32: #{gcn_layer_forward.1} parent=1 // pred_region
      _
    $region33: #{gcn_layer_forward.1} parent=1 // pred_fallthru
      _
    // Predicated region
    $region34: #{gcn_layer_forward.1} parent=1 // pred_check
      _
    $region35: #{gcn_layer_forward.1} parent=1 // pred_check_branch
      %885 = sbr.rel (0) target = $region37
    $region36: #{gcn_layer_forward.1} parent=1 // pred_region
      _
    $region37: #{gcn_layer_forward.1} parent=1 // pred_fallthru
      _
    %886 = vsyncpa [#allocation3], 1

</llo_original>
